<compile_context>
chip_gen: v5e
topology: v5e:2x2
jax: 0.10.0
libtpu: 0.0.40
codegen_flags: <defaults>
</compile_context>

<pallas_src>
import functools

import jax
import jax.numpy as jnp
from jax.experimental import pallas as pl
from jax.experimental.pallas import tpu as pltpu

IN_DIM = 2     # true input feature dim
HID = 128      # hidden size of the MLP
OUT_DIM = 1    # true output dim
NEG_SLOPE = 0.2


def _leaky_relu(x, slope):
    return jnp.where(x > 0, x, slope * x)


def _round_up(n, m):
    return ((n + m - 1) // m) * m


def ebm_kernel(x_ref, w1_ref, b1_ref, w2_ref, b2_ref, w3n_ref, b3n_ref, o_ref):
    # x_ref:   [TB, 2]    f32   (batch tile)
    # w1_ref:  [2, 128]   f32      b1_ref: [1, 128] f32
    # w2_ref:  [128, 128] bf16     b2_ref: [1, 128] f32
    # w3n_ref: [1, 128]   f32   (== -w3^T)
    # b3n_ref: [1]        f32   (== -(b3 + c), SMEM)
    # o_ref:   [TB, 1]    f32
    x = x_ref[...]

    # Layer 1 on the VPU: two broadcast FMAs instead of a K=128 matmul where
    # 126/128 of K would be zero padding.
    h1 = (x[:, 0:1] * w1_ref[0:1, :]
          + x[:, 1:2] * w1_ref[1:2, :]
          + b1_ref[...])
    h1 = _leaky_relu(h1, NEG_SLOPE)

    # Layer 2: the one real matmul. bf16 operands feed the MXU at full rate,
    # accumulation stays in f32.
    h2 = jnp.dot(h1.astype(jnp.bfloat16), w2_ref[...],
                 preferred_element_type=jnp.float32)
    h2 = _leaky_relu(h2 + b2_ref[...], NEG_SLOPE)

    # Layer 3 with the output negation and the constant c already folded in:
    # VPU multiply + cross-lane reduction (XLU), no third MXU pass.
    o_ref[...] = (jnp.sum(h2 * w3n_ref[...], axis=-1, keepdims=True)
                  + b3n_ref[0])


@functools.partial(jax.jit, static_argnames=("block_b",))
def ebm_forward(x, params, *, block_b=1024):
    """x: [B, 2] float32 -> log_prob: [B, 1] float32."""
    w1, b1, w2, b2, w3, b3, c = params
    B = x.shape[0]

    # Batch tile: multiple of 8 sublanes, at most `block_b` (sweepable; sized
    # to stay well inside the 32 MiB default scoped VMEM, incl. v7x).
    TB = min(block_b, _round_up(B, 8))
    B_pad = _round_up(B, TB)
    if B_pad != B:
        x = jnp.pad(x, ((0, B_pad - B), (0, 0)))
    grid = (B_pad // TB,)

    # Weight preprocessing (tiny, one-time): bf16 for the surviving matmul,
    # fold "-f(x) - c" into the last layer.
    w2_bf16 = w2.astype(jnp.bfloat16)
    w3n = (-w3.reshape(HID))[None, :]          # [1, 128]
    b3n = -(b3.reshape(OUT_DIM) + c)           # [1]
    b1_r = b1[None, :]                         # [1, 128]
    b2_r = b2[None, :]                         # [1, 128]

    def resident(shape):
        # Same block every grid step -> stays resident in VMEM.
        return pl.BlockSpec(shape, lambda i: (0, 0))

    weight_bytes = (IN_DIM * HID * 4 + HID * 4      # w1, b1
                    + HID * HID * 2 + HID * 4       # w2 (bf16), b2
                    + HID * 4 + 4)                  # w3n, b3n
    cost = pl.CostEstimate(
        flops=2 * B_pad * HID * HID + 8 * B_pad * HID,
        transcendentals=0,
        bytes_accessed=B_pad * (IN_DIM + OUT_DIM) * 4 + weight_bytes,
    )

    out = pl.pallas_call(
        ebm_kernel,
        out_shape=jax.ShapeDtypeStruct((B_pad, OUT_DIM), jnp.float32),
        grid_spec=pltpu.PrefetchScalarGridSpec(
            num_scalar_prefetch=0,
            grid=grid,
            in_specs=[
                pl.BlockSpec((TB, IN_DIM), lambda i: (i, 0)),   # x tile
                resident((IN_DIM, HID)),                        # w1
                resident((1, HID)),                             # b1
                resident((HID, HID)),                           # w2 (bf16)
                resident((1, HID)),                             # b2
                resident((1, HID)),                             # -w3^T
                pl.BlockSpec(memory_space=pltpu.SMEM),          # -(b3 + c)
            ],
            out_specs=pl.BlockSpec((TB, OUT_DIM), lambda i: (i, 0)),
        ),
        compiler_params=pltpu.CompilerParams(
            dimension_semantics=("parallel",)),
        cost_estimate=cost,
    )(x, w1, b1_r, w2_bf16, b2_r, w3n, b3n)

    if B_pad != B:
        out = out[:B]
    return out


def init_params(key):
    """Deterministic init mimicking PyTorch nn.Linear defaults.
    Weights are stored as (in, out) so the forward computes x @ W + b."""
    k1, k2, k3, k4, k5, k6 = jax.random.split(key, 6)

    def lin(kw, kb, fan_in, fan_out):
        bound = 1.0 / jnp.sqrt(fan_in)
        w = jax.random.uniform(kw, (fan_in, fan_out), jnp.float32,
                               -bound, bound)
        b = jax.random.uniform(kb, (fan_out,), jnp.float32, -bound, bound)
        return w, b

    w1, b1 = lin(k1, k2, IN_DIM, HID)
    w2, b2 = lin(k3, k4, HID, HID)
    w3, b3 = lin(k5, k6, HID, OUT_DIM)
    c = jnp.array([1.0], jnp.float32)   # nn.Parameter(torch.tensor([1.0]))
    return (w1, b1, w2, b2, w3, b3, c)


def ebm_reference(x, params):
    w1, b1, w2, b2, w3, b3, c = params
    h = x @ w1 + b1
    h = jnp.where(h > 0, h, NEG_SLOPE * h)
    h = h @ w2 + b2
    h = jnp.where(h > 0, h, NEG_SLOPE * h)
    out = h @ w3 + b3
    return -out - c


if __name__ == "__main__":
    key = jax.random.PRNGKey(0)
    k_params, k_x = jax.random.split(key)

    params = init_params(k_params)

    # Small single-tile case.
    B = 8
    x = jax.random.normal(k_x, (B, IN_DIM), jnp.float32)
    log_prob = ebm_forward(x, params)
    jax.block_until_ready(log_prob)
    ref = ebm_reference(x, params)
    assert log_prob.shape == (B, OUT_DIM)
    # bf16 operands on the 128x128 matmul -> relaxed tolerance vs f32 ref.
    assert jnp.allclose(log_prob, ref, atol=5e-2, rtol=5e-2), (
        float(jnp.max(jnp.abs(log_prob - ref))))

    # Multi-tile case (exercises the batch grid + remainder padding).
    B2 = 20
    x2 = jax.random.normal(jax.random.PRNGKey(1), (B2, IN_DIM), jnp.float32)
    log_prob2 = ebm_forward(x2, params, block_b=8)
    jax.block_until_ready(log_prob2)
    ref2 = ebm_reference(x2, params)
    assert log_prob2.shape == (B2, OUT_DIM)
    assert jnp.allclose(log_prob2, ref2, atol=5e-2, rtol=5e-2), (
        float(jnp.max(jnp.abs(log_prob2 - ref2))))

    print("KERNEL_OK")
</pallas_src>

<mosaic_0001>
module attributes {stable_mosaic.version = 11 : i64} {
  func.func @ebm_kernel(%arg0: i32, %arg1: memref<8x2xf32, #tpu.memory_space<vmem>>, %arg2: memref<2x128xf32, #tpu.memory_space<vmem>>, %arg3: memref<1x128xf32, #tpu.memory_space<vmem>>, %arg4: memref<128x128xbf16, #tpu.memory_space<vmem>>, %arg5: memref<1x128xf32, #tpu.memory_space<vmem>>, %arg6: memref<1x128xf32, #tpu.memory_space<vmem>>, %arg7: memref<1xf32, #tpu.memory_space<smem>>, %arg8: memref<8x1xf32, #tpu.memory_space<vmem>>) attributes {dimension_semantics = [#tpu.dimension_semantics<parallel>], iteration_bounds = array<i64: 1>, scalar_prefetch = 0 : i64, scratch_operands = 0 : i64, tpu.core_type = #tpu.core_type<tc>, window_params = [{transform_indices = @transform_0, window_bounds = array<i64: 8, 2>}, {pipeline_mode = #tpu.pipeline_mode<synchronous>, transform_indices = @transform_1, window_bounds = array<i64: 2, 128>}, {pipeline_mode = #tpu.pipeline_mode<synchronous>, transform_indices = @transform_2, window_bounds = array<i64: 1, 128>}, {pipeline_mode = #tpu.pipeline_mode<synchronous>, transform_indices = @transform_3, window_bounds = array<i64: 128, 128>}, {pipeline_mode = #tpu.pipeline_mode<synchronous>, transform_indices = @transform_4, window_bounds = array<i64: 1, 128>}, {pipeline_mode = #tpu.pipeline_mode<synchronous>, transform_indices = @transform_5, window_bounds = array<i64: 1, 128>}, {transform_indices = @transform_6, window_bounds = array<i64: 1>}, {transform_indices = @transform_7, window_bounds = array<i64: 8, 1>}]} {
    %c0 = arith.constant 0 : index
    %c0_0 = arith.constant 0 : index
    %0 = vector.load %arg1[%c0, %c0_0] : memref<8x2xf32, #tpu.memory_space<vmem>>, vector<8x2xf32>
    %1 = vector.extract_strided_slice %0 {offsets = [0, 0], sizes = [8, 1], strides = [1, 1]} : vector<8x2xf32> to vector<8x1xf32>
    %c0_1 = arith.constant 0 : index
    %c0_2 = arith.constant 0 : index
    %2 = vector.load %arg2[%c0_1, %c0_2] : memref<2x128xf32, #tpu.memory_space<vmem>>, vector<1x128xf32>
    %3 = vector.broadcast %1 : vector<8x1xf32> to vector<8x128xf32>
    %4 = vector.broadcast %2 : vector<1x128xf32> to vector<8x128xf32>
    %5 = arith.mulf %3, %4 : vector<8x128xf32>
    %6 = vector.extract_strided_slice %0 {offsets = [0, 1], sizes = [8, 1], strides = [1, 1]} : vector<8x2xf32> to vector<8x1xf32>
    %c1 = arith.constant 1 : index
    %c0_3 = arith.constant 0 : index
    %7 = vector.load %arg2[%c1, %c0_3] : memref<2x128xf32, #tpu.memory_space<vmem>>, vector<1x128xf32>
    %8 = vector.broadcast %6 : vector<8x1xf32> to vector<8x128xf32>
    %9 = vector.broadcast %7 : vector<1x128xf32> to vector<8x128xf32>
    %10 = arith.mulf %8, %9 : vector<8x128xf32>
    %11 = arith.addf %5, %10 : vector<8x128xf32>
    %c0_4 = arith.constant 0 : index
    %c0_5 = arith.constant 0 : index
    %12 = vector.load %arg3[%c0_4, %c0_5] : memref<1x128xf32, #tpu.memory_space<vmem>>, vector<1x128xf32>
    %13 = vector.broadcast %12 : vector<1x128xf32> to vector<8x128xf32>
    %14 = arith.addf %11, %13 : vector<8x128xf32>
    %cst = arith.constant 0.000000e+00 : f32
    %15 = vector.broadcast %cst : f32 to vector<8x128xf32>
    %16 = arith.cmpf ogt, %14, %15 : vector<8x128xf32>
    %cst_6 = arith.constant 2.000000e-01 : f32
    %17 = vector.broadcast %cst_6 : f32 to vector<8x128xf32>
    %18 = arith.mulf %17, %14 : vector<8x128xf32>
    %19 = arith.select %16, %14, %18 : vector<8x128xi1>, vector<8x128xf32>
    %20 = arith.truncf %19 : vector<8x128xf32> to vector<8x128xbf16>
    %c0_7 = arith.constant 0 : index
    %c0_8 = arith.constant 0 : index
    %21 = vector.load %arg4[%c0_7, %c0_8] : memref<128x128xbf16, #tpu.memory_space<vmem>>, vector<128x128xbf16>
    %cst_9 = arith.constant dense<0.000000e+00> : vector<8x128xf32>
    %22 = tpu.matmul %20, %21, %cst_9 {dimension_numbers = #tpu.dot_dimension_numbers<[1], [0], [0], [1], [0, 0, 1, 1], [], []>} : vector<8x128xbf16>, vector<128x128xbf16>, vector<8x128xf32> -> vector<8x128xf32>
    %c0_10 = arith.constant 0 : index
    %c0_11 = arith.constant 0 : index
    %23 = vector.load %arg5[%c0_10, %c0_11] : memref<1x128xf32, #tpu.memory_space<vmem>>, vector<1x128xf32>
    %24 = vector.broadcast %23 : vector<1x128xf32> to vector<8x128xf32>
    %25 = arith.addf %22, %24 : vector<8x128xf32>
    %cst_12 = arith.constant 0.000000e+00 : f32
    %26 = vector.broadcast %cst_12 : f32 to vector<8x128xf32>
    %27 = arith.cmpf ogt, %25, %26 : vector<8x128xf32>
    %cst_13 = arith.constant 2.000000e-01 : f32
    %28 = vector.broadcast %cst_13 : f32 to vector<8x128xf32>
    %29 = arith.mulf %28, %25 : vector<8x128xf32>
    %30 = arith.select %27, %25, %29 : vector<8x128xi1>, vector<8x128xf32>
    %c0_14 = arith.constant 0 : index
    %c0_15 = arith.constant 0 : index
    %31 = vector.load %arg6[%c0_14, %c0_15] : memref<1x128xf32, #tpu.memory_space<vmem>>, vector<1x128xf32>
    %32 = vector.broadcast %31 : vector<1x128xf32> to vector<8x128xf32>
    %33 = arith.mulf %30, %32 : vector<8x128xf32>
    %cst_16 = arith.constant dense<0.000000e+00> : vector<8xf32>
    %34 = vector.multi_reduction <add>, %33, %cst_16 [1] : vector<8x128xf32> to vector<8xf32>
    %35 = vector.shape_cast %34 : vector<8xf32> to vector<8x1xf32>
    %c0_17 = arith.constant 0 : index
    %36 = memref.load %arg7[%c0_17] : memref<1xf32, #tpu.memory_space<smem>>
    %37 = vector.broadcast %36 : f32 to vector<8x1xf32>
    %38 = arith.addf %35, %37 : vector<8x1xf32>
    %c0_18 = arith.constant 0 : index
    %c0_19 = arith.constant 0 : index
    %39 = vector.load %arg8[%c0_18, %c0_19] : memref<8x1xf32, #tpu.memory_space<vmem>>, vector<8x1xf32>
    tpu.vector_store %arg8[%c0_18, %c0_19], %38 {strides = array<i32>} : memref<8x1xf32, #tpu.memory_space<vmem>>, vector<8x1xf32>,
    return
  }
  func.func @transform_0(%arg0: i32) -> (i32, i32) {
    %c0_i32 = arith.constant 0 : i32
    %c0_i32_0 = arith.constant 0 : i32
    return %arg0, %c0_i32 : i32, i32
  }
  func.func @transform_1(%arg0: i32) -> (i32, i32) {
    %c0_i32 = arith.constant 0 : i32
    %c0_i32_0 = arith.constant 0 : i32
    %c0_i32_1 = arith.constant 0 : i32
    return %c0_i32, %c0_i32_0 : i32, i32
  }
  func.func @transform_2(%arg0: i32) -> (i32, i32) {
    %c0_i32 = arith.constant 0 : i32
    %c0_i32_0 = arith.constant 0 : i32
    %c0_i32_1 = arith.constant 0 : i32
    return %c0_i32, %c0_i32_0 : i32, i32
  }
  func.func @transform_3(%arg0: i32) -> (i32, i32) {
    %c0_i32 = arith.constant 0 : i32
    %c0_i32_0 = arith.constant 0 : i32
    %c0_i32_1 = arith.constant 0 : i32
    return %c0_i32, %c0_i32_0 : i32, i32
  }
  func.func @transform_4(%arg0: i32) -> (i32, i32) {
    %c0_i32 = arith.constant 0 : i32
    %c0_i32_0 = arith.constant 0 : i32
    %c0_i32_1 = arith.constant 0 : i32
    return %c0_i32, %c0_i32_0 : i32, i32
  }
  func.func @transform_5(%arg0: i32) -> (i32, i32) {
    %c0_i32 = arith.constant 0 : i32
    %c0_i32_0 = arith.constant 0 : i32
    %c0_i32_1 = arith.constant 0 : i32
    return %c0_i32, %c0_i32_0 : i32, i32
  }
  func.func @transform_6(%arg0: i32) -> i32 {
    %c0_i32 = arith.constant 0 : i32
    %c0_i32_0 = arith.constant 0 : i32
    return %c0_i32 : i32
  }
  func.func @transform_7(%arg0: i32) -> (i32, i32) {
    %c0_i32 = arith.constant 0 : i32
    %c0_i32_0 = arith.constant 0 : i32
    return %arg0, %c0_i32 : i32, i32
  }
}

</mosaic_0001>

<llo_original>
// kernel: ebm_forward.1
$region0: #{ebm_forward.1}
  #allocation0 [shape = 'u32[]', space=smem, size = 0x4, offset = 0x4, fixed_abs, tag = 'smem constant byte address 0x4 - core index']
  #allocation1 [shape = 'u32[72,128]{1,0:T(1,128)}', space=vmem, size = 0x9000, scoped, tag = 'internal scratch']
  #allocation2 [shape = 'f32[1]{0:T(128)S(6)}', space=smem, size = 0x200, scoped, tag = 'scoped memory for ebm_forward.1']
  %s0 = inlined_call_operand.vmem [shape: f32[8,2], index: 0, kind: input, shape index: {}]
  %s1 = inlined_call_operand.vmem [shape: f32[2,128], index: 1, kind: input, shape index: {}]
  %s2 = inlined_call_operand.vmem [shape: f32[1,128], index: 2, kind: input, shape index: {}]
  %s3 = inlined_call_operand.vmem [shape: bf16[128,128], index: 3, kind: input, shape index: {}]
  %s4 = inlined_call_operand.vmem [shape: f32[1,128], index: 4, kind: input, shape index: {}]
  %s5 = inlined_call_operand.vmem [shape: f32[1,128], index: 5, kind: input, shape index: {}]
  %s6 = inlined_call_operand.<no memory space> [shape: f32[1], index: 6, kind: input, shape index: {}]
  %s7 = inlined_call_operand.vmem [shape: f32[8,1], index: 7, kind: output, shape index: {}]
  %s8 = sld [smem:[#allocation0]]
  $region38: #{ebm_forward.1} parent=0
    _
  %s10 = ssub.s32 1, %s8
  %s11 = scalar_select 0, %s10, %s8
  %12 = sst [smem:[#allocation2]] %s6
  // Predicated region
  $region2: #{ebm_forward.1} parent=0 // pred_check
    _
  $region3: #{ebm_forward.1} parent=0 // pred_check_branch
    %14 = sbr.rel (0) target = $region5
  $region4: #{ebm_forward.1} parent=0 // pred_region
    _
  $region5: #{ebm_forward.1} parent=0 // pred_fallthru
    _
  // Predicated region
  $region6: #{ebm_forward.1} parent=0 // pred_check
    _
  $region7: #{ebm_forward.1} parent=0 // pred_check_branch
    %16 = sbr.rel (0) target = $region9
  $region8: #{ebm_forward.1} parent=0 // pred_region
    _
  $region9: #{ebm_forward.1} parent=0 // pred_fallthru
    _
  // Predicated region
  $region10: #{ebm_forward.1} parent=0 // pred_check
    _
  $region11: #{ebm_forward.1} parent=0 // pred_check_branch
    %18 = sbr.rel (0) target = $region13
  $region12: #{ebm_forward.1} parent=0 // pred_region
    _
  $region13: #{ebm_forward.1} parent=0 // pred_fallthru
    _
  // Predicated region
  $region14: #{ebm_forward.1} parent=0 // pred_check
    _
  $region15: #{ebm_forward.1} parent=0 // pred_check_branch
    %20 = sbr.rel (0) target = $region17
  $region16: #{ebm_forward.1} parent=0 // pred_region
    _
  $region17: #{ebm_forward.1} parent=0 // pred_fallthru
    _
  // Predicated region
  $region18: #{ebm_forward.1} parent=0 // pred_check
    _
  $region19: #{ebm_forward.1} parent=0 // pred_check_branch
    %22 = sbr.rel (0) target = $region21
  $region20: #{ebm_forward.1} parent=0 // pred_region
    _
  $region21: #{ebm_forward.1} parent=0 // pred_fallthru
    _
  // Predicated region
  $region22: #{ebm_forward.1} parent=0 // pred_check
    _
  $region23: #{ebm_forward.1} parent=0 // pred_check_branch
    %24 = sbr.rel (0) target = $region25
  $region24: #{ebm_forward.1} parent=0 // pred_region
    _
  $region25: #{ebm_forward.1} parent=0 // pred_fallthru
    _
  // Predicated region
  $region26: #{ebm_forward.1} parent=0 // pred_check
    _
  $region27: #{ebm_forward.1} parent=0 // pred_check_branch
    %26 = sbr.rel (0) target = $region29
  $region28: #{ebm_forward.1} parent=0 // pred_region
    _
  $region29: #{ebm_forward.1} parent=0 // pred_fallthru
    _
  %v27 = vld [vmem:[%s0] sm:$0xff]
  %v28 = vld [vmem:[%s1] sm:$0x1]
  %30 = vset.pattern.permute.xlu0 0
  %31 = vperm.xlu0 %30, %v27
  %v32 = vpop.permute.xlu0 %31
  %v34 = vperm.slane %v28, 0
  %v35 = vmul.f32 %v32, %v34
  %v36 = vld [vmem:[%s1 + $0x1] sm:$0x1]
  %37 = vset.pattern.permute.xlu0 1
  %38 = vperm.xlu0 %37, %v27
  %v39 = vpop.permute.xlu0 %38
  %v41 = vperm.slane %v36, 0
  %v42 = vmul.f32 %v39, %v41
  %v43 = vadd.f32 %v35, %v42
  %v44 = vld [vmem:[%s2] sm:$0x1]
  %v46 = vperm.slane %v44, 0
  %v48 = vadd.f32 %v43, %v46
  %vm49 = vcmp.gt.f32.partialorder %v48, 0.0
  %v50 = vmul.f32 %v48, 0.2
  %v51 = vsel %vm49, %v48, %v50
  %v52 = vpack.c.bf16 %v51, %v51
  %v53 = vld [vmem:[%s3] sm:$0xf]
  %v54 = vld [vmem:[%s3 + $0x4] sm:$0xf]
  %v55 = vld [vmem:[%s3 + $0x8] sm:$0xf]
  %v56 = vld [vmem:[%s3 + $0xc] sm:$0xf]
  %v57 = vld [vmem:[%s3 + $0x10] sm:$0xf]
  %v58 = vld [vmem:[%s3 + $0x14] sm:$0xf]
  %v59 = vld [vmem:[%s3 + $0x18] sm:$0xf]
  %v60 = vld [vmem:[%s3 + $0x1c] sm:$0xf]
  %v61 = vld [vmem:[%s3 + $0x20] sm:$0xf]
  %v62 = vld [vmem:[%s3 + $0x24] sm:$0xf]
  %v63 = vld [vmem:[%s3 + $0x28] sm:$0xf]
  %v64 = vld [vmem:[%s3 + $0x2c] sm:$0xf]
  %v65 = vld [vmem:[%s3 + $0x30] sm:$0xf]
  %v66 = vld [vmem:[%s3 + $0x34] sm:$0xf]
  %v67 = vld [vmem:[%s3 + $0x38] sm:$0xf]
  %v68 = vld [vmem:[%s3 + $0x3c] sm:$0xf]
  %v69 = vld [vmem:[%s4] sm:$0x1]
  %v71 = vperm.slane %v69, 0
  %v89 = vunpack.c.l.b16 %v53
  %v90 = vunpack.c.l.b16 %v54
  %v91 = vunpack.c.l.b16 %v55
  %v92 = vunpack.c.l.b16 %v56
  %v93 = vunpack.c.l.b16 %v57
  %v94 = vunpack.c.l.b16 %v58
  %v95 = vunpack.c.l.b16 %v59
  %v96 = vunpack.c.l.b16 %v60
  %v97 = vunpack.c.l.b16 %v61
  %v98 = vunpack.c.l.b16 %v62
  %v99 = vunpack.c.l.b16 %v63
  %v100 = vunpack.c.l.b16 %v64
  %v101 = vunpack.c.l.b16 %v65
  %v102 = vunpack.c.l.b16 %v66
  %v103 = vunpack.c.l.b16 %v67
  %v104 = vunpack.c.l.b16 %v68
  %v105 = vpack.c.b16 %v90, %v89
  %v106 = vpack.c.b16 %v92, %v91
  %v107 = vpack.c.b16 %v94, %v93
  %v108 = vpack.c.b16 %v96, %v95
  %v109 = vpack.c.b16 %v98, %v97
  %v110 = vpack.c.b16 %v100, %v99
  %v111 = vpack.c.b16 %v102, %v101
  %v112 = vpack.c.b16 %v104, %v103
  %121 = vmatpush.bf16.msra.mxu0 %v112
  %122 = vmatpush.bf16.msra.mxu0 %v111
  %123 = vmatpush.bf16.msra.mxu0 %v110
  %124 = vmatpush.bf16.msra.mxu0 %v109
  %125 = vmatpush.bf16.msra.mxu0 %v108
  %126 = vmatpush.bf16.msra.mxu0 %v107
  %127 = vmatpush.bf16.msra.mxu0 %v106
  %128 = vmatpush.bf16.msra.mxu0 %v105
  %129 = vmatmul.bf16.gmra.mxu0 %v52
  %v130 = vpop.f32.mrf.mxu0
  %v131 = vadd.f32 %v71, %v130
  %v132 = vpop.f32.mrf.mxu0
  %133 = vdwg.mxu0
  %vm134 = vcmp.gt.f32.partialorder %v131, 0.0
  %v135 = vmul.f32 %v131, 0.2
  %v136 = vsel %vm134, %v131, %v135
  %v137 = vld [vmem:[%s5] sm:$0x1]
  %v139 = vperm.slane %v137, 0
  %v141 = vmul.f32 %v136, %v139
  %142 = vadd.xlane.f32.xlu0 %v141
  %v143 = vpop.xlane.xlu0 %142
  %s144 = sld [smem:[#allocation2]]
  %v145 = vstv %s144
  %v146 = vadd.f32 %v143, %v145
  %vm147 = vcmask 7168
  %148 = vst.msk [vmem:[%s7] sm:$0xff] %vm147, %v146
  // Predicated region
  $region30: #{ebm_forward.1} parent=0 // pred_check
    _
  $region31: #{ebm_forward.1} parent=0 // pred_check_branch
    %150 = sbr.rel (0) target = $region33
  $region32: #{ebm_forward.1} parent=0 // pred_region
    _
  $region33: #{ebm_forward.1} parent=0 // pred_fallthru
    _
  // Predicated region
  $region34: #{ebm_forward.1} parent=0 // pred_check
    _
  $region35: #{ebm_forward.1} parent=0 // pred_check_branch
    %152 = sbr.rel (0) target = $region37
  $region36: #{ebm_forward.1} parent=0 // pred_region
    _
  $region37: #{ebm_forward.1} parent=0 // pred_fallthru
    _

</llo_original>
